<compile_context>
chip_gen: v6e
topology: v6e:2x2x1
jax: 0.10.0
libtpu: 0.0.40
codegen_flags: <defaults>
</compile_context>

<pallas_src>
import functools

import jax
import jax.numpy as jnp
from jax import lax
from jax.experimental import pallas as pl
from jax.experimental.pallas import tpu as pltpu

LANES = 128                    # lane (fast) axis
SUBLANES = 8                   # sublane axis
TARGET_BLOCK_BYTES = 4 << 20   # ~4 MiB per input block (native dtype)


def _num_tensorcores_per_device():
    """Best-effort TensorCores per device: v7x has 2, v5e/v6e have 1."""
    try:
        kind = jax.devices()[0].device_kind.lower()
    except Exception:
        return 1
    return 2 if "v7" in kind else 1


def _abs_sum_kernel(o_ref, t_ref, part_ref, acc_ref, *,
                    rows, block_rows, blocks_per_part, need_mask,
                    acc_rows, diff_dtype):
    p = pl.program_id(0)   # part (maps across TensorCores where available)
    j = pl.program_id(1)   # reduction step within the part

    @pl.when(j == 0)
    def _():
        acc_ref[...] = jnp.zeros_like(acc_ref)

    # Inputs are DMA'd in their native dtype; the elementwise diff runs in
    # `diff_dtype` (bf16 stays bf16 -> half the vreg traffic on v6e/v7x; the
    # compiler upcasts transparently on v5e). Accumulation is always f32.
    o = o_ref[...].astype(diff_dtype)
    t = t_ref[...].astype(diff_dtype)
    ad = jnp.abs(t - o)

    def _accumulate(vals):
        # Group-sum into `acc_rows` rows of the accumulator: acc_rows/8 vregs
        # give 4-8 independent add chains (keeps all VALU slots busy) instead
        # of one serial chain through a single vreg.
        g = vals.reshape(-1, acc_rows, LANES).astype(jnp.float32)
        acc_ref[...] += jnp.sum(g, axis=0)

    if need_mask:
        logical = p * blocks_per_part + j
        # Only the block that extends past `rows` (partial tail) and clamped
        # out-of-range logical blocks need masking. Gate the iota/cmp/select
        # so full blocks pay nothing extra.
        is_partial = (logical + 1) * block_rows > rows

        @pl.when(is_partial)
        def _():
            # int32 row ids: would only overflow past 2^31 rows (~1 TiB of
            # f32), so not a practical concern.
            row_ids = (logical * block_rows +
                       lax.broadcasted_iota(jnp.int32, (block_rows, LANES), 0))
            _accumulate(jnp.where(row_ids < rows, ad, jnp.zeros_like(ad)))

        @pl.when(jnp.logical_not(is_partial))
        def _():
            _accumulate(ad)
    else:
        _accumulate(ad)

    @pl.when(j == pl.num_programs(1) - 1)
    def _():
        # Collapse the wide accumulator to a single (8,128) vreg once, at the
        # very end of the reduction axis.
        part_ref[...] = jnp.sum(
            acc_ref[...].reshape(-1, SUBLANES, LANES), axis=0
        ).reshape(1, SUBLANES, LANES)


def abs_sum_loss(output, target):
    """sum(|target - output|) == F.l1_loss(target, output, reduction='sum')."""
    assert output.shape == target.shape, "l1_loss(sum) kernel assumes matching shapes"

    out_dtype = jnp.result_type(output.dtype, target.dtype)
    if (not jnp.issubdtype(out_dtype, jnp.floating)) or out_dtype == jnp.float64:
        out_dtype = jnp.float32   # TPU has no native f64; clamp to f32

    o_flat = jnp.ravel(output)
    t_flat = jnp.ravel(target)
    n = o_flat.shape[0]
    if n == 0:
        # Empty input: the grid would never write the output; short-circuit.
        return jnp.zeros((), out_dtype)

    # Pad only up to one (8,128) tile (zeros contribute |0-0| = 0). Block-level
    # remainders are handled in-kernel by the gated tail mask.
    chunk = SUBLANES * LANES
    n_pad = (-n) % chunk
    if n_pad:
        o_flat = jnp.pad(o_flat, (0, n_pad))
        t_flat = jnp.pad(t_flat, (0, n_pad))

    rows = o_flat.shape[0] // LANES              # multiple of 8
    o2d = o_flat.reshape(rows, LANES)
    t2d = t_flat.reshape(rows, LANES)

    # ~4 MiB per input block in the *native* dtype, aligned to the packed
    # sublane tile (8 rows f32, 16 rows bf16, 32 rows int8/fp8).
    itemsize = max(output.dtype.itemsize, target.dtype.itemsize)
    row_align = max(SUBLANES, 32 // itemsize)
    max_rows = max(row_align,
                   (TARGET_BLOCK_BYTES // (LANES * itemsize)) // row_align * row_align)
    block_rows = min(max_rows, rows)

    # Wide accumulator: largest of 64/32/16/8 rows that divides block_rows.
    for cand in (64, 32, 16, 8):
        if block_rows % cand == 0:
            acc_rows = cand
            break

    blocks_total = pl.cdiv(rows, block_rows)
    # Part split only pays off with >=2 TensorCores per device (v7x); on
    # v5e/v6e it is just a serial loop plus a wasted clamped block.
    # NOTE: on v7x, verify in xprof that the "parallel" axis actually lands on
    # both TensorCores; if not, switch it to pltpu.CORE_PARALLEL.
    num_parts = 2 if (blocks_total >= 2 and _num_tensorcores_per_device() >= 2) else 1
    blocks_per_part = pl.cdiv(blocks_total, num_parts)
    clamp_needed = num_parts * blocks_per_part != blocks_total
    need_mask = (rows % block_rows != 0) or clamp_needed

    def in_index_map(p, j):
        logical = p * blocks_per_part + j
        if clamp_needed:
            # Clamp fully-out-of-range logical blocks to a valid block; the
            # in-kernel row mask zeroes their contribution.
            logical = jnp.minimum(logical, blocks_total - 1)
        return (logical, 0)

    # bf16 diff stays in bf16 (accumulation is f32 either way); everything
    # else (f32, mixed, ints) is cast to f32 inside the kernel.
    if output.dtype == target.dtype == jnp.bfloat16:
        diff_dtype = jnp.bfloat16
    else:
        diff_dtype = jnp.float32

    block_bytes = block_rows * LANES * itemsize
    # Double-buffered inputs (2 arrays x 2 buffers) + output/scratch/slack.
    vmem_limit = int(min(40 << 20, max(16 << 20, 4 * block_bytes + (8 << 20))))

    kernel = functools.partial(
        _abs_sum_kernel,
        rows=rows,
        block_rows=block_rows,
        blocks_per_part=blocks_per_part,
        need_mask=need_mask,
        acc_rows=acc_rows,
        diff_dtype=diff_dtype,
    )

    partials = pl.pallas_call(
        kernel,
        out_shape=jax.ShapeDtypeStruct((num_parts, SUBLANES, LANES), jnp.float32),
        grid=(num_parts, blocks_per_part),
        in_specs=[
            pl.BlockSpec((block_rows, LANES), in_index_map),
            pl.BlockSpec((block_rows, LANES), in_index_map),
        ],
        out_specs=pl.BlockSpec((1, SUBLANES, LANES), lambda p, j: (p, 0, 0)),
        scratch_shapes=[pltpu.VMEM((acc_rows, LANES), jnp.float32)],
        compiler_params=pltpu.CompilerParams(
            dimension_semantics=("parallel", "arbitrary"),
            vmem_limit_bytes=vmem_limit,
        ),
    )(o2d, t2d)

    return jnp.sum(partials).astype(out_dtype)


if __name__ == "__main__":
    key = jax.random.PRNGKey(0)

    # Primary: small NCHW-like tensors (batch=2, channels=4, spatial=16x16).
    k1, k2 = jax.random.split(key)
    out_f32 = jax.random.normal(k1, (2, 4, 16, 16), dtype=jnp.float32)
    tgt_f32 = jax.random.normal(k2, (2, 4, 16, 16), dtype=jnp.float32)
    loss = abs_sum_loss(out_f32, tgt_f32)
    jax.block_until_ready(loss)
    ref = jnp.sum(jnp.abs(tgt_f32 - out_f32))
    assert jnp.allclose(loss, ref, rtol=1e-5, atol=1e-5), (loss, ref)

    # Ragged element count (exercises the tiny tile-pad path).
    k3, k4 = jax.random.split(k1)
    o2 = jax.random.normal(k3, (3, 5, 17), dtype=jnp.float32)
    t2 = jax.random.normal(k4, (3, 5, 17), dtype=jnp.float32)
    l2 = abs_sum_loss(o2, t2)
    r2 = jnp.sum(jnp.abs(t2 - o2))
    assert jnp.allclose(l2, r2, rtol=1e-5, atol=1e-5), (l2, r2)

    # Multi-block f32 with gated tail masking (rows % block_rows != 0).
    k5, k6 = jax.random.split(k2)
    o3 = jax.random.normal(k5, (300, 5000), dtype=jnp.float32)
    t3 = jax.random.normal(k6, (300, 5000), dtype=jnp.float32)
    l3 = abs_sum_loss(o3, t3)
    r3 = jnp.sum(jnp.abs(t3 - o3))
    assert jnp.allclose(l3, r3, rtol=1e-4, atol=1e-2), (l3, r3)

    # bf16 inputs: native-dtype DMA, bf16 diff, f32 accumulation.
    o4 = out_f32.astype(jnp.bfloat16)
    t4 = tgt_f32.astype(jnp.bfloat16)
    l4 = abs_sum_loss(o4, t4)
    r4 = jnp.sum(jnp.abs(t4.astype(jnp.float32) - o4.astype(jnp.float32)))
    assert jnp.allclose(l4.astype(jnp.float32), r4, rtol=2e-2, atol=1e-1), (l4, r4)

    # Multi-block bf16 with gated tail masking.
    k7, k8 = jax.random.split(k5)
    o5 = jax.random.normal(k7, (512, 5000), dtype=jnp.bfloat16)
    t5 = jax.random.normal(k8, (512, 5000), dtype=jnp.bfloat16)
    l5 = abs_sum_loss(o5, t5)
    r5 = jnp.sum(jnp.abs(t5.astype(jnp.float32) - o5.astype(jnp.float32)))
    assert jnp.allclose(l5.astype(jnp.float32), r5, rtol=1e-2, atol=1.0), (l5, r5)

    jax.block_until_ready((l2, l3, l4, l5))
    print("KERNEL_OK")
</pallas_src>

<mosaic_0001>
module attributes {stable_mosaic.version = 11 : i64} {
  func.func @_abs_sum_kernel(%arg0: i32, %arg1: i32, %arg2: memref<16x128xf32, #tpu.memory_space<vmem>>, %arg3: memref<16x128xf32, #tpu.memory_space<vmem>>, %arg4: memref<1x8x128xf32, #tpu.memory_space<vmem>>, %arg5: memref<16x128xf32, #tpu.memory_space<vmem>>) attributes {dimension_semantics = [#tpu.dimension_semantics<parallel>, #tpu.dimension_semantics<arbitrary>], iteration_bounds = array<i64: 1, 1>, scalar_prefetch = 0 : i64, scratch_operands = 1 : i64, tpu.core_type = #tpu.core_type<tc>, window_params = [{transform_indices = @transform_0, window_bounds = array<i64: 16, 128>}, {transform_indices = @transform_1, window_bounds = array<i64: 16, 128>}, {transform_indices = @transform_2, window_bounds = array<i64: 1, 8, 128>}]} {
    %c0_i32 = arith.constant 0 : i32
    %0 = arith.cmpi eq, %arg1, %c0_i32 : i32
    %1 = arith.extui %0 : i1 to i32
    %c0_i32_0 = arith.constant 0 : i32
    %2 = arith.cmpi ne, %1, %c0_i32_0 : i32
    scf.if %2 {
      %cst_10 = arith.constant 0.000000e+00 : f32
      %15 = vector.broadcast %cst_10 : f32 to vector<16x128xf32>
      %c0_11 = arith.constant 0 : index
      %c0_12 = arith.constant 0 : index
      %16 = vector.load %arg5[%c0_11, %c0_12] : memref<16x128xf32, #tpu.memory_space<vmem>>, vector<16x128xf32>
      tpu.vector_store %arg5[%c0_11, %c0_12], %15 {strides = array<i32>} : memref<16x128xf32, #tpu.memory_space<vmem>>, vector<16x128xf32>,
    } else {
    }
    %c0 = arith.constant 0 : index
    %c0_1 = arith.constant 0 : index
    %3 = vector.load %arg2[%c0, %c0_1] : memref<16x128xf32, #tpu.memory_space<vmem>>, vector<16x128xf32>
    %c0_2 = arith.constant 0 : index
    %c0_3 = arith.constant 0 : index
    %4 = vector.load %arg3[%c0_2, %c0_3] : memref<16x128xf32, #tpu.memory_space<vmem>>, vector<16x128xf32>
    %5 = arith.subf %4, %3 : vector<16x128xf32>
    %6 = math.absf %5 : vector<16x128xf32>
    %7 = vector.shape_cast %6 : vector<16x128xf32> to vector<1x16x128xf32>
    %c0_4 = arith.constant 0 : index
    %c0_5 = arith.constant 0 : index
    %8 = vector.load %arg5[%c0_4, %c0_5] : memref<16x128xf32, #tpu.memory_space<vmem>>, vector<16x128xf32>
    %cst = arith.constant dense<0.000000e+00> : vector<16x128xf32>
    %9 = vector.multi_reduction <add>, %7, %cst [0] : vector<1x16x128xf32> to vector<16x128xf32>
    %10 = arith.addf %8, %9 : vector<16x128xf32>
    %c0_6 = arith.constant 0 : index
    %c0_7 = arith.constant 0 : index
    %11 = vector.load %arg5[%c0_6, %c0_7] : memref<16x128xf32, #tpu.memory_space<vmem>>, vector<16x128xf32>
    tpu.vector_store %arg5[%c0_6, %c0_7], %10 {strides = array<i32>} : memref<16x128xf32, #tpu.memory_space<vmem>>, vector<16x128xf32>,
    %c0_i32_8 = arith.constant 0 : i32
    %12 = arith.cmpi eq, %arg1, %c0_i32_8 : i32
    %13 = arith.extui %12 : i1 to i32
    %c0_i32_9 = arith.constant 0 : i32
    %14 = arith.cmpi ne, %13, %c0_i32_9 : i32
    scf.if %14 {
      %c0_10 = arith.constant 0 : index
      %c0_11 = arith.constant 0 : index
      %15 = vector.load %arg5[%c0_10, %c0_11] : memref<16x128xf32, #tpu.memory_space<vmem>>, vector<16x128xf32>
      %16 = vector.shape_cast %15 : vector<16x128xf32> to vector<2x8x128xf32>
      %cst_12 = arith.constant dense<0.000000e+00> : vector<8x128xf32>
      %17 = vector.multi_reduction <add>, %16, %cst_12 [0] : vector<2x8x128xf32> to vector<8x128xf32>
      %18 = vector.shape_cast %17 : vector<8x128xf32> to vector<1x8x128xf32>
      %c0_13 = arith.constant 0 : index
      %c0_14 = arith.constant 0 : index
      %c0_15 = arith.constant 0 : index
      %19 = vector.load %arg4[%c0_13, %c0_14, %c0_15] : memref<1x8x128xf32, #tpu.memory_space<vmem>>, vector<1x8x128xf32>
      tpu.vector_store %arg4[%c0_13, %c0_14, %c0_15], %18 {strides = array<i32>} : memref<1x8x128xf32, #tpu.memory_space<vmem>>, vector<1x8x128xf32>,
    } else {
    }
    return
  }
  func.func @transform_0(%arg0: i32, %arg1: i32) -> (i32, i32) {
    %c1_i32 = arith.constant 1 : i32
    %0 = arith.muli %arg0, %c1_i32 : i32
    %1 = arith.addi %0, %arg1 : i32
    %c0_i32 = arith.constant 0 : i32
    %c0_i32_0 = arith.constant 0 : i32
    return %1, %c0_i32 : i32, i32
  }
  func.func @transform_1(%arg0: i32, %arg1: i32) -> (i32, i32) {
    %c1_i32 = arith.constant 1 : i32
    %0 = arith.muli %arg0, %c1_i32 : i32
    %1 = arith.addi %0, %arg1 : i32
    %c0_i32 = arith.constant 0 : i32
    %c0_i32_0 = arith.constant 0 : i32
    return %1, %c0_i32 : i32, i32
  }
  func.func @transform_2(%arg0: i32, %arg1: i32) -> (i32, i32, i32) {
    %c0_i32 = arith.constant 0 : i32
    %c0_i32_0 = arith.constant 0 : i32
    %c0_i32_1 = arith.constant 0 : i32
    return %arg0, %c0_i32, %c0_i32_0 : i32, i32, i32
  }
}

</mosaic_0001>

<llo_original>
// kernel: tpu_custom_call.1
$region0: #{tpu_custom_call.1}
  #allocation0 [shape = 'u32[]', space=smem, size = 0x4, offset = 0x4, fixed_abs, tag = 'smem constant byte address 0x4 - core index']
  #allocation1 [shape = 'u32[144,128]{1,0:T(1,128)}', space=vmem, size = 0x12000, scoped, tag = 'internal scratch']
  #allocation2 [shape = 'f32[16,128]{1,0:T(8,128)}', space=vmem, size = 0x2000, scoped, tag = 'scratch operand']
  %s0 = inlined_call_operand.hbm [shape: f32[16,128], index: 0, kind: input, shape index: {}]
  %s1 = inlined_call_operand.hbm [shape: f32[16,128], index: 1, kind: input, shape index: {}]
  %s2 = inlined_call_operand.hbm [shape: f32[1,8,128], index: 2, kind: output, shape index: {}]
  %s3 = sld [smem:[#allocation0]]
  $region34: #{tpu_custom_call.1} parent=0
    _
  %s5 = ssub.s32 1, %s3
  %s6 = scalar_select 0, %s5, %s3
  $region1: #{tpu_custom_call.1} parent=0
    #allocation3 [shape = 'u8[8192]{0}', space=vmem, size = 0x2000, scoped, tag = 'input window, operand 0, single buffered']
    #allocation4 [shape = 's32[1]{0}', space=sflag, size = 0x4, scoped, tag = 'scoped memory for tpu_custom_call.1']
    #allocation5 [shape = 's32[1]{0}', space=sflag, size = 0x4, scoped, tag = 'scoped memory for tpu_custom_call.1']
    #allocation6 [shape = 'u8[8192]{0}', space=vmem, size = 0x2000, scoped, tag = 'input window, operand 1, single buffered']
    #allocation7 [shape = 's32[1]{0}', space=sflag, size = 0x4, scoped, tag = 'scoped memory for tpu_custom_call.1']
    #allocation8 [shape = 'u8[4096]{0}', space=vmem, size = 0x1000, scoped, tag = 'output window, operand 0, single buffered']
    %7 = vsyncpa [#allocation4], 0
    %8 = vsyncpa [#allocation7], 0
    %9 = vsyncpa [#allocation5], 0
    // Predicated region
    $region2: #{tpu_custom_call.1} parent=1 // pred_check
      _
    $region3: #{tpu_custom_call.1} parent=1 // pred_check_branch
      %11 = sbr.rel (0) target = $region5
    $region4: #{tpu_custom_call.1} parent=1 // pred_region
      %s12 = sadd.s32 0, 0
      %s13 = smul.u32 2, %s12
      %s15 = ssub.s32 256, 256
      %16 = vsyncadd [#allocation4], %s15
      %s17 = smul.addr %s13, 128
      %s18 = scalar_lea.hbm %s0, %s17
      %s19 = sshll.u32 [#allocation3], 4
      %s20 = int_to_ptr.vmem [resolvable:$true] %s19
      %25 = dma.hbm_to_vmem [thread:$0]  %s18, 256, %s20, [#allocation4], 128, 128, 8
    $region5: #{tpu_custom_call.1} parent=1 // pred_fallthru
      _
    // Predicated region
    $region6: #{tpu_custom_call.1} parent=1 // pred_check
      _
    $region7: #{tpu_custom_call.1} parent=1 // pred_check_branch
      %27 = sbr.rel (0) target = $region9
    $region8: #{tpu_custom_call.1} parent=1 // pred_region
      %s28 = sadd.s32 0, 0
      %s29 = smul.u32 2, %s28
      %s31 = ssub.s32 256, 256
      %32 = vsyncadd [#allocation7], %s31
      %s33 = smul.addr %s29, 128
      %s34 = scalar_lea.hbm %s1, %s33
      %s35 = sshll.u32 [#allocation6], 4
      %s36 = int_to_ptr.vmem [resolvable:$true] %s35
      %41 = dma.hbm_to_vmem [thread:$0]  %s34, 256, %s36, [#allocation7], 128, 128, 8
    $region9: #{tpu_custom_call.1} parent=1 // pred_fallthru
      _
    // Predicated region
    $region10: #{tpu_custom_call.1} parent=1 // pred_check
      _
    $region11: #{tpu_custom_call.1} parent=1 // pred_check_branch
      %43 = sbr.rel (0) target = $region13
    $region12: #{tpu_custom_call.1} parent=1 // pred_region
      %44 = dma.done [#allocation4], 256
    $region13: #{tpu_custom_call.1} parent=1 // pred_fallthru
      _
    // Predicated region
    $region14: #{tpu_custom_call.1} parent=1 // pred_check
      _
    $region15: #{tpu_custom_call.1} parent=1 // pred_check_branch
      %46 = sbr.rel (0) target = $region17
    $region16: #{tpu_custom_call.1} parent=1 // pred_region
      %47 = dma.done [#allocation7], 256
    $region17: #{tpu_custom_call.1} parent=1 // pred_fallthru
      _
    %s48 = sadd.s32 0, 0
    %s49 = smul.u32 2, %s48
    %s50 = sadd.s32 0, 0
    %s51 = smul.u32 2, %s50
    %p52 = scmp.eq.s32.totalorder 0, 0
    // Predicated region
    $region18: #{tpu_custom_call.1} parent=1 // pred_check
      %p53 = pneg %p52
    $region19: #{tpu_custom_call.1} parent=1 // pred_check_branch
      %55 = sbr.rel (%p53) target = $region21
    $region20: #{tpu_custom_call.1} parent=1 // pred_region
      %56 = vst [vmem:[#allocation2] sm:$0xff] 0.0
      %57 = vst [vmem:[#allocation2 + $0x8] sm:$0xff] 0.0
    $region21: #{tpu_custom_call.1} parent=1 // pred_fallthru
      _
    %v58 = vld [vmem:[#allocation3] sm:$0xff]
    %v59 = vld [vmem:[#allocation3 + $0x8] sm:$0xff]
    %v60 = vld [vmem:[#allocation6] sm:$0xff]
    %v61 = vld [vmem:[#allocation6 + $0x8] sm:$0xff]
    %v62 = vsub.f32 %v60, %v58
    %v63 = vsub.f32 %v61, %v59
    %v64 = vand.u32 2147483647, %v62
    %v65 = vand.u32 2147483647, %v63
    %v66 = vld [vmem:[#allocation2] sm:$0xff]
    %v67 = vld [vmem:[#allocation2 + $0x8] sm:$0xff]
    %v68 = vadd.f32 %v64, 0.0
    %v69 = vadd.f32 %v65, 0.0
    %v70 = vadd.f32 %v66, %v68
    %v71 = vadd.f32 %v67, %v69
    %72 = vst [vmem:[#allocation2] sm:$0xff] %v70
    %73 = vst [vmem:[#allocation2 + $0x8] sm:$0xff] %v71
    // Predicated region
    $region22: #{tpu_custom_call.1} parent=1 // pred_check
      %p74 = pneg %p52
    $region23: #{tpu_custom_call.1} parent=1 // pred_check_branch
      %76 = sbr.rel (%p74) target = $region25
    $region24: #{tpu_custom_call.1} parent=1 // pred_region
      %v77 = vld [vmem:[#allocation2] sm:$0xff]
      %v78 = vld [vmem:[#allocation2 + $0x8] sm:$0xff]
      %v79 = vadd.f32 %v77, %v78
      %80 = vst [vmem:[#allocation8] sm:$0xff] %v79
    $region25: #{tpu_custom_call.1} parent=1 // pred_fallthru
      _
    // Predicated region
    $region26: #{tpu_custom_call.1} parent=1 // pred_check
      _
    $region27: #{tpu_custom_call.1} parent=1 // pred_check_branch
      %82 = sbr.rel (0) target = $region29
    $region28: #{tpu_custom_call.1} parent=1 // pred_region
      %s84 = ssub.s32 128, 128
      %85 = vsyncadd [#allocation5], %s84
      %s87 = sshll.u32 [#allocation8], 4
      %s88 = int_to_ptr.vmem [resolvable:$true] %s87
      %90 = dma.vmem_to_hbm [thread:$0]  %s88, 128, %s2, [#allocation5]
    $region29: #{tpu_custom_call.1} parent=1 // pred_fallthru
      _
    // Predicated region
    $region30: #{tpu_custom_call.1} parent=1 // pred_check
      _
    $region31: #{tpu_custom_call.1} parent=1 // pred_check_branch
      %92 = sbr.rel (0) target = $region33
    $region32: #{tpu_custom_call.1} parent=1 // pred_region
      %93 = dma.done [#allocation5], 128
    $region33: #{tpu_custom_call.1} parent=1 // pred_fallthru
      _
    %94 = vsyncpa [#allocation4], 1
    %95 = vsyncpa [#allocation7], 1
    %96 = vsyncpa [#allocation5], 1

</llo_original>
